<compile_context>
chip_gen: v5e
topology: v5e:2x2
jax: 0.10.0
libtpu: 0.0.40
codegen_flags: <defaults>
</compile_context>

<pallas_src>
import functools

import jax
import jax.numpy as jnp
from jax.experimental import pallas as pl
from jax.experimental.pallas import tpu as pltpu


# ----------------------------------------------------------------------------
# Pallas kernel
# ----------------------------------------------------------------------------

def _cam_kernel(gamma_ref, x_ref, o_ref, *, block_c, num_row_blocks):
    # gamma_ref: (1,) f32 scalar in SMEM
    # x_ref:     (block_b, C, Np)        full feature slab(s) (VMEM, input dtype)
    # o_ref:     (block_b, block_c, Np)  one row block of the output
    x = x_ref[...]                                   # (bb, C, Np), input dtype
    xb = x.astype(jnp.bfloat16)                      # bf16 MXU operand (f32 acc)

    if num_row_blocks == 1:
        xr, xrb = x, xb                              # (bb, C, Np)
    else:
        r = pl.program_id(1)
        start = pl.multiple_of(r * block_c, block_c)
        xr = x_ref[:, pl.ds(start, block_c), :]      # (bb, block_c, Np)
        xrb = xr.astype(jnp.bfloat16)

    # energy[b, c, d] = <x[b, c, :], x[b, d, :]>  (row block of the C x C matrix)
    energy = jnp.einsum("bcn,bdn->bcd", xrb, xb,
                        preferred_element_type=jnp.float32)      # (bb, block_c, C)

    # softmax(max_row(E) - E)  ==  exp(min_row(E) - E) / sum(exp(min_row(E) - E))
    stab = jnp.min(energy, axis=-1, keepdims=True) - energy
    e = jnp.exp(stab)
    denom = jnp.sum(e, axis=-1, keepdims=True)
    attn = e * pl.reciprocal(denom, approx=True)     # divide on the EUP slot

    out = jnp.einsum("bcd,bdn->bcn", attn.astype(jnp.bfloat16), xb,
                     preferred_element_type=jnp.float32)         # (bb, block_c, Np)

    # Residual uses the original-precision x (exact skip path).
    o_ref[...] = (gamma_ref[0] * out + xr.astype(jnp.float32)).astype(o_ref.dtype)


# ----------------------------------------------------------------------------
# Wrapper
# ----------------------------------------------------------------------------

def _pick_block_b(B, C, Np, in_itemsize, out_itemsize, budget_bytes=4 << 20):
    """Largest divisor of B (<= 8) whose per-step footprint fits the budget."""
    per_b = C * Np * (2 * in_itemsize + 2 * out_itemsize + 2)  # dbl-buf io + bf16 copy
    for cand in range(min(B, 8), 0, -1):
        if B % cand == 0 and cand * per_b <= budget_bytes:
            return cand
    return 1


def cam_module(x_nchw, gamma, *, block_c=None, block_b=None):
    """Channel attention: (B, C, H, W) -> (B, C, H, W).

    block_c: optional channel-row tile (must divide C, multiple of 8).  For
             production shapes prefer >= 128 (v5e MXU) / 256 (v6e/v7x MXU);
             default is the whole C (single row block).
    block_b: batch elements per grid step (amortizes per-step overhead at
             small C); auto-picked when None.
    """
    B, C, H, W = x_nchw.shape
    N = H * W
    Np = ((N + 127) // 128) * 128            # lane-dense last dim -> unmasked stores
    x = x_nchw.reshape(B, C, N)
    if Np != N:
        # Exact: zero columns contribute nothing to energy or to attn @ x.
        x = jnp.pad(x, ((0, 0), (0, 0), (0, Np - N)))

    if block_c is None or block_c >= C:
        block_c = C
    else:
        assert C % block_c == 0, "block_c must divide C"
        assert block_c % 8 == 0, "row tile must be a multiple of 8 sublanes"
    num_row_blocks = C // block_c

    in_itemsize = x.dtype.itemsize
    out_itemsize = x.dtype.itemsize
    if block_b is None:
        block_b = (_pick_block_b(B, C, Np, in_itemsize, out_itemsize)
                   if num_row_blocks == 1 else 1)
    assert B % block_b == 0, "block_b must divide B"

    gamma = jnp.asarray(gamma, jnp.float32).reshape(1)

    # VMEM budget: double-buffered input slab + double-buffered output block
    # + in-kernel bf16 copy of the slab + headroom.  (v5e default scoped limit
    # is only 16 MiB; raise it explicitly.)
    in_block_bytes = block_b * C * Np * in_itemsize
    out_block_bytes = block_b * block_c * Np * out_itemsize
    needed = 2 * in_block_bytes + 2 * out_block_bytes + in_block_bytes // 2 + (4 << 20)
    vmem_limit = int(min(100 << 20, max(32 << 20, needed)))

    # Two (C x C x Np) matmuls (2 flops/MAC); exp over the (C, C) energy.
    cost = pl.CostEstimate(
        flops=4 * B * C * C * Np,
        transcendentals=B * C * C,
        bytes_accessed=2 * B * C * Np * in_itemsize + 4,
    )

    kernel = functools.partial(
        _cam_kernel, block_c=block_c, num_row_blocks=num_row_blocks)

    out = pl.pallas_call(
        kernel,
        out_shape=jax.ShapeDtypeStruct((B, C, Np), x.dtype),
        grid=(B // block_b, num_row_blocks),
        in_specs=[
            # gamma scalar lives in SMEM, untiled.
            pl.BlockSpec(memory_space=pltpu.MemorySpace.SMEM),
            # Full (block_b, C, Np) slab; index_map ignores the row axis so it
            # is fetched once per batch block and stays VMEM-resident.
            pl.BlockSpec((block_b, C, Np), lambda b, r: (b, 0, 0)),
        ],
        out_specs=pl.BlockSpec((block_b, block_c, Np), lambda b, r: (b, r, 0)),
        compiler_params=pltpu.CompilerParams(
            # Batch axis parallel (megacore shards B, never duplicates the
            # slab); row-block axis is an ordinary loop.
            dimension_semantics=("parallel", "arbitrary"),
            vmem_limit_bytes=vmem_limit,
        ),
        cost_estimate=cost,
    )(gamma, x)

    if Np != N:
        out = out[:, :, :N]
    return out.reshape(B, C, H, W)


# ----------------------------------------------------------------------------
# References
# ----------------------------------------------------------------------------

def cam_ref_f32(x, gamma):
    """Literal transcription of the PyTorch forward, full f32 precision."""
    B, C, H, W = x.shape
    xf = x.reshape(B, C, H * W)
    energy = jnp.einsum("bcn,bdn->bcd", xf, xf,
                        precision=jax.lax.Precision.HIGHEST)
    energy_new = jnp.max(energy, axis=-1, keepdims=True) - energy
    attn = jax.nn.softmax(energy_new, axis=-1)
    out = jnp.einsum("bcd,bdn->bcn", attn, xf,
                     precision=jax.lax.Precision.HIGHEST)
    return (gamma * out).reshape(B, C, H, W) + x


def cam_ref_matched(x, gamma):
    """Same forward, but with the kernel's bf16 MXU operand casts (f32 acc)."""
    B, C, H, W = x.shape
    xf = x.reshape(B, C, H * W).astype(jnp.float32)
    xb = xf.astype(jnp.bfloat16)
    energy = jnp.einsum("bcn,bdn->bcd", xb, xb,
                        preferred_element_type=jnp.float32)
    energy_new = jnp.max(energy, axis=-1, keepdims=True) - energy
    attn = jax.nn.softmax(energy_new, axis=-1)
    out = jnp.einsum("bcd,bdn->bcn", attn.astype(jnp.bfloat16), xb,
                     preferred_element_type=jnp.float32)
    return (gamma * out + xf).reshape(B, C, H, W)


# ----------------------------------------------------------------------------
# Main
# ----------------------------------------------------------------------------

if __name__ == "__main__":
    key = jax.random.PRNGKey(0)
    k1, k2, k3 = jax.random.split(key, 3)

    # Tolerance accounts for the (intentional) bf16 rounding of the second
    # matmul's attn operand + the EUP approx reciprocal; the energy/softmax
    # path is bit-matched to the reference (same bf16 x, f32 accumulation).
    RTOL = ATOL = 3e-2

    # ---- Test 1: small module-sized input, batch-packed single row block ---
    B, C, H, W = 2, 4, 16, 16
    x1 = jax.random.normal(k1, (B, C, H, W), jnp.float32)
    # PyTorch initializes gamma to zero (output == input); use nonzero gamma
    # so the attention path is actually exercised.
    gamma1 = jnp.float32(0.5)
    out1 = cam_module(x1, gamma1)
    jax.block_until_ready(out1)
    ref1 = cam_ref_matched(x1, gamma1)
    assert out1.shape == (B, C, H, W)
    assert jnp.allclose(out1, ref1, rtol=RTOL, atol=ATOL)

    # ---- Test 2: larger C with channel-row tiling (VMEM-bounded path) ------
    B2, C2, H2, W2 = 2, 16, 16, 16
    x2 = jax.random.normal(k2, (B2, C2, H2, W2), jnp.float32)
    gamma2 = jnp.float32(-0.25)
    out2 = cam_module(x2, gamma2, block_c=8)
    jax.block_until_ready(out2)
    ref2 = cam_ref_matched(x2, gamma2)
    assert out2.shape == (B2, C2, H2, W2)
    assert jnp.allclose(out2, ref2, rtol=RTOL, atol=ATOL)

    # ---- Test 3: non-128-aligned spatial size exercises the N zero-padding -
    B3, C3, H3, W3 = 1, 8, 10, 10          # N = 100 -> padded to 128
    x3 = jax.random.normal(k3, (B3, C3, H3, W3), jnp.float32)
    gamma3 = jnp.float32(0.75)
    out3 = cam_module(x3, gamma3)
    jax.block_until_ready(out3)
    ref3 = cam_ref_matched(x3, gamma3)
    assert out3.shape == (B3, C3, H3, W3)
    assert jnp.allclose(out3, ref3, rtol=RTOL, atol=ATOL)

    print("KERNEL_OK")
</pallas_src>

<mosaic_0001>
module attributes {stable_mosaic.version = 11 : i64} {
  func.func @_cam_kernel(%arg0: i32, %arg1: i32, %arg2: memref<1xf32, #tpu.memory_space<smem>>, %arg3: memref<2x4x256xf32, #tpu.memory_space<vmem>>, %arg4: memref<2x4x256xf32, #tpu.memory_space<vmem>>) attributes {dimension_semantics = [#tpu.dimension_semantics<parallel>, #tpu.dimension_semantics<arbitrary>], iteration_bounds = array<i64: 1, 1>, scalar_prefetch = 0 : i64, scratch_operands = 0 : i64, tpu.core_type = #tpu.core_type<tc>, window_params = [{transform_indices = @transform_0, window_bounds = array<i64: 1>}, {transform_indices = @transform_1, window_bounds = array<i64: 2, 4, 256>}, {transform_indices = @transform_2, window_bounds = array<i64: 2, 4, 256>}]} {
    %c0 = arith.constant 0 : index
    %c0_0 = arith.constant 0 : index
    %c0_1 = arith.constant 0 : index
    %0 = vector.load %arg3[%c0, %c0_0, %c0_1] : memref<2x4x256xf32, #tpu.memory_space<vmem>>, vector<2x4x256xf32>
    %1 = arith.truncf %0 : vector<2x4x256xf32> to vector<2x4x256xbf16>
    "tpu.trace_start"() <{level = 10 : i32, message = "bcn,bdn->bcd"}> : () -> ()
    %cst = arith.constant dense<0.000000e+00> : vector<2x4x4xf32>
    %2 = tpu.matmul %1, %1, %cst {dimension_numbers = #tpu.dot_dimension_numbers<[2], [2], [1], [1], [0, 0, 0, 1, 1, 1], [0], [0]>} : vector<2x4x256xbf16>, vector<2x4x256xbf16>, vector<2x4x4xf32> -> vector<2x4x4xf32>
    "tpu.trace_stop"() : () -> ()
    %cst_2 = arith.constant dense<0x7F800000> : vector<2x4xf32>
    %3 = vector.multi_reduction <minimumf>, %2, %cst_2 [2] : vector<2x4x4xf32> to vector<2x4xf32>
    %4 = vector.shape_cast %3 : vector<2x4xf32> to vector<2x4x1xf32>
    %5 = vector.broadcast %4 : vector<2x4x1xf32> to vector<2x4x4xf32>
    %6 = arith.subf %5, %2 : vector<2x4x4xf32>
    %7 = math.exp %6 : vector<2x4x4xf32>
    %cst_3 = arith.constant dense<0.000000e+00> : vector<2x4xf32>
    %8 = vector.multi_reduction <add>, %7, %cst_3 [2] : vector<2x4x4xf32> to vector<2x4xf32>
    %9 = vector.shape_cast %8 : vector<2x4xf32> to vector<2x4x1xf32>
    %10 = tpu.reciprocal %9 {approx = true} : vector<2x4x1xf32> -> vector<2x4x1xf32>
    %11 = vector.broadcast %10 : vector<2x4x1xf32> to vector<2x4x4xf32>
    %12 = arith.mulf %7, %11 : vector<2x4x4xf32>
    %13 = arith.truncf %12 : vector<2x4x4xf32> to vector<2x4x4xbf16>
    "tpu.trace_start"() <{level = 10 : i32, message = "bcd,bdn->bcn"}> : () -> ()
    %cst_4 = arith.constant dense<0.000000e+00> : vector<2x4x256xf32>
    %14 = tpu.matmul %13, %1, %cst_4 {dimension_numbers = #tpu.dot_dimension_numbers<[2], [1], [1], [2], [0, 0, 0, 1, 1, 2], [0], [0]>} : vector<2x4x4xbf16>, vector<2x4x256xbf16>, vector<2x4x256xf32> -> vector<2x4x256xf32>
    "tpu.trace_stop"() : () -> ()
    %c0_5 = arith.constant 0 : index
    %15 = memref.load %arg2[%c0_5] : memref<1xf32, #tpu.memory_space<smem>>
    %16 = vector.broadcast %15 : f32 to vector<2x4x256xf32>
    %17 = arith.mulf %16, %14 : vector<2x4x256xf32>
    %18 = arith.addf %17, %0 : vector<2x4x256xf32>
    %c0_6 = arith.constant 0 : index
    %c0_7 = arith.constant 0 : index
    %c0_8 = arith.constant 0 : index
    %19 = vector.load %arg4[%c0_6, %c0_7, %c0_8] : memref<2x4x256xf32, #tpu.memory_space<vmem>>, vector<2x4x256xf32>
    tpu.vector_store %arg4[%c0_6, %c0_7, %c0_8], %18 {strides = array<i32>} : memref<2x4x256xf32, #tpu.memory_space<vmem>>, vector<2x4x256xf32>,
    return
  }
  func.func @transform_0(%arg0: i32, %arg1: i32) -> i32 {
    %c0_i32 = arith.constant 0 : i32
    %c0_i32_0 = arith.constant 0 : i32
    return %c0_i32 : i32
  }
  func.func @transform_1(%arg0: i32, %arg1: i32) -> (i32, i32, i32) {
    %c0_i32 = arith.constant 0 : i32
    %c0_i32_0 = arith.constant 0 : i32
    %c0_i32_1 = arith.constant 0 : i32
    return %arg0, %c0_i32, %c0_i32_0 : i32, i32, i32
  }
  func.func @transform_2(%arg0: i32, %arg1: i32) -> (i32, i32, i32) {
    %c0_i32 = arith.constant 0 : i32
    %c0_i32_0 = arith.constant 0 : i32
    return %arg0, %arg1, %c0_i32 : i32, i32, i32
  }
}

</mosaic_0001>

<llo_original>
// kernel: tpu_custom_call.1
$region0: #{tpu_custom_call.1}
  #allocation0 [shape = 'u32[]', space=smem, size = 0x4, offset = 0x4, fixed_abs, tag = 'smem constant byte address 0x4 - core index']
  #allocation1 [shape = 'u32[72,128]{1,0:T(1,128)}', space=vmem, size = 0x9000, scoped, tag = 'internal scratch']
  #allocation2 [shape = 'f32[1]{0:T(128)S(6)}', space=smem, size = 0x200, scoped, tag = 'scoped memory for tpu_custom_call.1']
  %s0 = inlined_call_operand.<no memory space> [shape: f32[1], index: 0, kind: input, shape index: {}]
  %s1 = inlined_call_operand.hbm [shape: f32[2,4,256], index: 1, kind: input, shape index: {}]
  %s2 = inlined_call_operand.hbm [shape: f32[2,4,256], index: 2, kind: output, shape index: {}]
  %s3 = sld [smem:[#allocation0]]
  $region22: #{tpu_custom_call.1} parent=0
    _
  %s5 = ssub.s32 1, %s3
  %s6 = scalar_select 0, %s5, %s3
  %7 = sst [smem:[#allocation2]] %s0
  $region1: #{tpu_custom_call.1} parent=0
    #allocation3 [shape = 'u8[8192]{0}', space=vmem, size = 0x2000, scoped, tag = 'input window, operand 1, single buffered']
    #allocation4 [shape = 's32[1]{0}', space=sflag, size = 0x4, scoped, tag = 'scoped memory for tpu_custom_call.1']
    #allocation5 [shape = 's32[1]{0}', space=sflag, size = 0x4, scoped, tag = 'scoped memory for tpu_custom_call.1']
    #allocation6 [shape = 'u8[8192]{0}', space=vmem, size = 0x2000, scoped, tag = 'output window, operand 0, single buffered']
    %8 = vsyncpa [#allocation4], 0
    %9 = vsyncpa [#allocation5], 0
    // Predicated region
    $region2: #{tpu_custom_call.1} parent=1 // pred_check
      _
    $region3: #{tpu_custom_call.1} parent=1 // pred_check_branch
      %11 = sbr.rel (0) target = $region5
    $region4: #{tpu_custom_call.1} parent=1 // pred_region
      _
    $region5: #{tpu_custom_call.1} parent=1 // pred_fallthru
      _
    // Predicated region
    $region6: #{tpu_custom_call.1} parent=1 // pred_check
      _
    $region7: #{tpu_custom_call.1} parent=1 // pred_check_branch
      %13 = sbr.rel (0) target = $region9
    $region8: #{tpu_custom_call.1} parent=1 // pred_region
      %15 = vsyncadd [#allocation4], 0
      %s16 = sshll.u32 %s1, 4
      %s17 = int_to_ptr.hbm [resolvable:$true] %s16
      %s18 = sshll.u32 [#allocation3], 4
      %s19 = int_to_ptr.vmem [resolvable:$true] %s18
      %24 = dma.hbm_to_vmem [thread:$0]  %s17, 256, %s19, [#allocation4], 128, 128, 8
    $region9: #{tpu_custom_call.1} parent=1 // pred_fallthru
      _
    // Predicated region
    $region10: #{tpu_custom_call.1} parent=1 // pred_check
      _
    $region11: #{tpu_custom_call.1} parent=1 // pred_check_branch
      %26 = sbr.rel (0) target = $region13
    $region12: #{tpu_custom_call.1} parent=1 // pred_region
      %28 = dma.done [#allocation4], 256
    $region13: #{tpu_custom_call.1} parent=1 // pred_fallthru
      _
    %v30 = vld [vmem:[#allocation3] sm:$0xff]
    %v31 = vld [vmem:[#allocation3 + $0x8] sm:$0xff]
    %34 = vst [vmem:[#allocation1] ss:$2 sm:$0xff] %v30
    %v35 = vld.sshfl [vmem:[#allocation1] sm:$0xff pattern:$0x75316420]
    %v36 = vld.sshfl [vmem:[#allocation1 + $0x8] sm:$0xff pattern:$0x75316420]
    %s37 = scalar_lea.vmem [#allocation1], 16
    %38 = vst [vmem:[%s37] ss:$2 sm:$0xff] %v31
    %v39 = vld.sshfl [vmem:[#allocation1 + $0x10] sm:$0xff pattern:$0x75316420]
    %v40 = vld.sshfl [vmem:[#allocation1 + $0x18] sm:$0xff pattern:$0x75316420]
    %v45 = vpack.c.bf16 %v36, %v35
    %v46 = vpack.c.bf16 %v40, %v39
    %v48 = vunpack.c.l.b16 %v45
    %v49 = vunpack.c.h.b16 %v45
    %v50 = vpack.c.b16 %v48, %v48
    %v51 = vpack.c.b16 %v49, %v49
    %54 = vmatpush.bf16.xpose.msra.mxu0 0
    %55 = vmatpush.bf16.xpose.msra.mxu0 0
    %56 = vmatpush.bf16.xpose.msra.mxu0 0
    %57 = vmatpush.bf16.xpose.msra.mxu0 0
    %58 = vmatpush.bf16.xpose.msra.mxu0 0
    %59 = vmatpush.bf16.xpose.msra.mxu0 0
    %60 = vmatpush.bf16.xpose.msra.mxu0 0
    %61 = vmatpush.bf16.xpose.msra.mxu0 %v50
    %62 = vmatmul.bf16.gmra.mxu0 %v50
    %v63 = vpop.f32.mrf.mxu0
    %v64 = vadd.f32 0.0, %v63
    %v65 = vpop.f32.mrf.mxu0
    %66 = vdwg.mxu0
    %67 = vmatpush.bf16.xpose.msra.mxu0 0
    %68 = vmatpush.bf16.xpose.msra.mxu0 0
    %69 = vmatpush.bf16.xpose.msra.mxu0 0
    %70 = vmatpush.bf16.xpose.msra.mxu0 0
    %71 = vmatpush.bf16.xpose.msra.mxu0 0
    %72 = vmatpush.bf16.xpose.msra.mxu0 0
    %73 = vmatpush.bf16.xpose.msra.mxu0 0
    %74 = vmatpush.bf16.xpose.msra.mxu0 %v51
    %75 = vmatmul.bf16.gmra.mxu0 %v51
    %v76 = vpop.f32.mrf.mxu0
    %v77 = vadd.f32 %v64, %v76
    %v78 = vpop.f32.mrf.mxu0
    %79 = vdwg.mxu0
    %v81 = vunpack.c.l.b16 %v46
    %v82 = vunpack.c.h.b16 %v46
    %v83 = vpack.c.b16 %v81, %v81
    %v84 = vpack.c.b16 %v82, %v82
    %87 = vmatpush.bf16.xpose.msra.mxu0 0
    %88 = vmatpush.bf16.xpose.msra.mxu0 0
    %89 = vmatpush.bf16.xpose.msra.mxu0 0
    %90 = vmatpush.bf16.xpose.msra.mxu0 0
    %91 = vmatpush.bf16.xpose.msra.mxu0 0
    %92 = vmatpush.bf16.xpose.msra.mxu0 0
    %93 = vmatpush.bf16.xpose.msra.mxu0 0
    %94 = vmatpush.bf16.xpose.msra.mxu0 %v83
    %95 = vmatmul.bf16.gmra.mxu0 %v83
    %v96 = vpop.f32.mrf.mxu0
    %v97 = vadd.f32 0.0, %v96
    %v98 = vpop.f32.mrf.mxu0
    %99 = vdwg.mxu0
    %100 = vmatpush.bf16.xpose.msra.mxu0 0
    %101 = vmatpush.bf16.xpose.msra.mxu0 0
    %102 = vmatpush.bf16.xpose.msra.mxu0 0
    %103 = vmatpush.bf16.xpose.msra.mxu0 0
    %104 = vmatpush.bf16.xpose.msra.mxu0 0
    %105 = vmatpush.bf16.xpose.msra.mxu0 0
    %106 = vmatpush.bf16.xpose.msra.mxu0 0
    %107 = vmatpush.bf16.xpose.msra.mxu0 %v84
    %108 = vmatmul.bf16.gmra.mxu0 %v84
    %v109 = vpop.f32.mrf.mxu0
    %v110 = vadd.f32 %v97, %v109
    %v111 = vpop.f32.mrf.mxu0
    %112 = vdwg.mxu0
    %vm113 = vcmask 27648
    %v114 = vsel %vm113, %v77, inf
    %115 = vmin.xlane.f32.xlu0 %v114
    %v116 = vpop.xlane.xlu0 %115
    %v117 = vsel %vm113, %v110, inf
    %118 = vmin.xlane.f32.xlu0 %v117
    %v119 = vpop.xlane.xlu0 %118
    %v120 = vsub.f32 %v116, %v77
    %v121 = vsub.f32 %v119, %v110
    %v122 = vmul.f32 %v120, 1.442695
    %v123 = vpow.pop %v122
    %v124 = vmul.f32 %v121, 1.442695
    %v125 = vpow.pop %v124
    %v126 = vsel %vm113, %v123, 0.0
    %127 = vadd.xlane.f32.xlu0 %v126
    %v128 = vpop.xlane.xlu0 %127
    %v129 = vsel %vm113, %v125, 0.0
    %130 = vadd.xlane.f32.xlu0 %v129
    %v131 = vpop.xlane.xlu0 %130
    %v132 = vrcp.pop %v128
    %v133 = vrcp.pop %v131
    %v134 = vmul.f32 %v123, %v132
    %v135 = vmul.f32 %v125, %v133
    %v136 = vpack.c.bf16 %v134, %v134
    %v137 = vpack.c.bf16 %v135, %v135
    %vm138 = vcmask 31744
    %v140 = vsel %vm138, %v136, 0
    %vm142 = vcmask 1041408
    %v144 = vsel %vm142, %v50, 0
    %v147 = vsel %vm142, %v51, 0
    %149 = vmatpush.bf16.msra.mxu0 0
    %150 = vmatpush.bf16.msra.mxu0 0
    %151 = vmatpush.bf16.msra.mxu0 0
    %152 = vmatpush.bf16.msra.mxu0 0
    %153 = vmatpush.bf16.msra.mxu0 0
    %154 = vmatpush.bf16.msra.mxu0 0
    %155 = vmatpush.bf16.msra.mxu0 0
    %156 = vmatpush.bf16.msra.mxu0 %v144
    %157 = vmatmul.bf16.gmra.mxu0 %v140
    %v158 = vpop.f32.mrf.mxu0
    %v159 = vadd.f32 0.0, %v158
    %v160 = vpop.f32.mrf.mxu0
    %161 = vdwg.mxu0
    %162 = vmatpush.bf16.msra.mxu0 0
    %163 = vmatpush.bf16.msra.mxu0 0
    %164 = vmatpush.bf16.msra.mxu0 0
    %165 = vmatpush.bf16.msra.mxu0 0
    %166 = vmatpush.bf16.msra.mxu0 0
    %167 = vmatpush.bf16.msra.mxu0 0
    %168 = vmatpush.bf16.msra.mxu0 0
    %169 = vmatpush.bf16.msra.mxu0 %v147
    %170 = vmatmul.bf16.gmra.mxu0 %v140
    %v171 = vpop.f32.mrf.mxu0
    %v172 = vadd.f32 0.0, %v171
    %v173 = vpop.f32.mrf.mxu0
    %174 = vdwg.mxu0
    %v176 = vsel %vm138, %v137, 0
    %v179 = vsel %vm142, %v83, 0
    %v182 = vsel %vm142, %v84, 0
    %184 = vmatpush.bf16.msra.mxu0 0
    %185 = vmatpush.bf16.msra.mxu0 0
    %186 = vmatpush.bf16.msra.mxu0 0
    %187 = vmatpush.bf16.msra.mxu0 0
    %188 = vmatpush.bf16.msra.mxu0 0
    %189 = vmatpush.bf16.msra.mxu0 0
    %190 = vmatpush.bf16.msra.mxu0 0
    %191 = vmatpush.bf16.msra.mxu0 %v179
    %192 = vmatmul.bf16.gmra.mxu0 %v176
    %v193 = vpop.f32.mrf.mxu0
    %v194 = vadd.f32 0.0, %v193
    %v195 = vpop.f32.mrf.mxu0
    %196 = vdwg.mxu0
    %197 = vmatpush.bf16.msra.mxu0 0
    %198 = vmatpush.bf16.msra.mxu0 0
    %199 = vmatpush.bf16.msra.mxu0 0
    %200 = vmatpush.bf16.msra.mxu0 0
    %201 = vmatpush.bf16.msra.mxu0 0
    %202 = vmatpush.bf16.msra.mxu0 0
    %203 = vmatpush.bf16.msra.mxu0 0
    %204 = vmatpush.bf16.msra.mxu0 %v182
    %205 = vmatmul.bf16.gmra.mxu0 %v176
    %v206 = vpop.f32.mrf.mxu0
    %v207 = vadd.f32 0.0, %v206
    %v208 = vpop.f32.mrf.mxu0
    %209 = vdwg.mxu0
    %s210 = sld [smem:[#allocation2]]
    %v211 = vstv %s210
    %v212 = vmul.f32 %v211, %v159
    %v213 = vmul.f32 %v211, %v172
    %v214 = vmul.f32 %v211, %v194
    %v215 = vmul.f32 %v211, %v207
    %216 = vst [vmem:[#allocation1] ss:$2 sm:$0xff] %v30
    %v217 = vld.sshfl [vmem:[#allocation1] sm:$0xff pattern:$0x75316420]
    %v218 = vld.sshfl [vmem:[#allocation1 + $0x8] sm:$0xff pattern:$0x75316420]
    %s219 = scalar_lea.vmem [#allocation1], 16
    %220 = vst [vmem:[%s219] ss:$2 sm:$0xff] %v31
    %v221 = vld.sshfl [vmem:[#allocation1 + $0x10] sm:$0xff pattern:$0x75316420]
    %v222 = vld.sshfl [vmem:[#allocation1 + $0x18] sm:$0xff pattern:$0x75316420]
    %v227 = vadd.f32 %v212, %v217
    %v228 = vadd.f32 %v213, %v218
    %v229 = vadd.f32 %v214, %v221
    %v230 = vadd.f32 %v215, %v222
    %v235 = vrot.slane %v228, 4
    %v236 = vrot.slane %v230, 4
    %vm237 = vcmask 1043456
    %v238 = vsel %vm237, %v227, %v235
    %v239 = vsel %vm237, %v229, %v236
    %242 = vst [vmem:[#allocation6] sm:$0xff] %v238
    %243 = vst [vmem:[#allocation6 + $0x8] sm:$0xff] %v239
    // Predicated region
    $region14: #{tpu_custom_call.1} parent=1 // pred_check
      _
    $region15: #{tpu_custom_call.1} parent=1 // pred_check_branch
      %245 = sbr.rel (0) target = $region17
    $region16: #{tpu_custom_call.1} parent=1 // pred_region
      %247 = vsyncadd [#allocation5], 0
      %s248 = sshll.u32 [#allocation6], 4
      %s249 = int_to_ptr.vmem [resolvable:$true] %s248
      %s250 = sshll.u32 %s2, 4
      %s251 = int_to_ptr.hbm [resolvable:$true] %s250
      %256 = dma.vmem_to_hbm [thread:$0]  %s249, 256, %s251, [#allocation5], 128, 128, 8
    $region17: #{tpu_custom_call.1} parent=1 // pred_fallthru
      _
    // Predicated region
    $region18: #{tpu_custom_call.1} parent=1 // pred_check
      _
    $region19: #{tpu_custom_call.1} parent=1 // pred_check_branch
      %258 = sbr.rel (0) target = $region21
    $region20: #{tpu_custom_call.1} parent=1 // pred_region
      %260 = dma.done [#allocation5], 256
    $region21: #{tpu_custom_call.1} parent=1 // pred_fallthru
      _
    %261 = vsyncpa [#allocation4], 1
    %262 = vsyncpa [#allocation5], 1

</llo_original>
